<compile_context>
chip_gen: v6e
topology: v6e:2x2x1
jax: 0.10.0
libtpu: 0.0.40
codegen_flags: <defaults>
</compile_context>

<pallas_src>
import functools

import jax
import jax.numpy as jnp
from jax.experimental import pallas as pl
from jax.experimental.pallas import tpu as pltpu

_MIB = 1024 * 1024


def _sublane_multiple(dtype) -> int:
    # Packed sublane granularity: 8 rows for 32-bit, 16 for 16-bit, 32 for 8-bit dtypes.
    return max(8, 32 // jnp.dtype(dtype).itemsize)


def _learnable_bias_kernel(x_ref, b_ref, o_ref, *, block_rows, compute_dtype):
    # x_ref: (block_rows, block_cols) tile of the flattened input.
    # b_ref: (rows_padded, 1) full bias column, VMEM-resident (constant block index).
    i = pl.program_id(0)
    start = i * block_rows
    if block_rows % 8 == 0:
        start = pl.multiple_of(start, 8)
    b = b_ref[pl.ds(start, block_rows), :]                     # (block_rows, 1)
    o_ref[...] = (x_ref[...].astype(compute_dtype) + b).astype(o_ref.dtype)


def learnable_bias(x: jax.Array, bias: jax.Array,
                   *, target_block_bytes: int = 8 * _MIB,
                   min_split_bytes: int = 2 * _MIB) -> jax.Array:
    """x: (N, C, H, W), bias: (1, C, 1, 1) -> x + bias (broadcast over N, H, W)."""
    N, C, H, W = x.shape
    assert bias.shape == (1, C, 1, 1), bias.shape

    rows = N * C
    cols = H * W
    itemsize = jnp.dtype(x.dtype).itemsize
    sub = _sublane_multiple(x.dtype)
    compute_dtype = jnp.promote_types(x.dtype, bias.dtype)

    # ---- block-size selection -------------------------------------------------
    if cols > 128 and sub * cols * itemsize > target_block_bytes:
        # Even one packed-sublane row-group of full width exceeds the budget:
        # block the column (lane) axis in 128-multiples so VMEM never overshoots.
        block_rows = sub
        bc = (target_block_bytes // (sub * itemsize)) // 128 * 128
        block_cols = int(max(128, min(bc, cols)))
        if block_cols != cols:
            block_cols = (block_cols // 128) * 128
    else:
        block_cols = cols
        row_bytes = max(1, cols * itemsize)
        max_rows = max(1, target_block_bytes // row_bytes)
        if max_rows >= rows:
            total_bytes = rows * cols * itemsize
            if total_bytes > min_split_bytes and rows >= 2 * sub:
                # Split a would-be single block into >=2 so both v7x TCs stream
                # (the grid axis is "parallel"); neutral on single-TC v5e/v6e.
                half = -(-rows // 2)
                block_rows = -(-half // sub) * sub
            else:
                block_rows = rows
        else:
            block_rows = max(sub, (max_rows // sub) * sub)
    block_rows = int(block_rows)
    block_cols = int(block_cols)

    grid_rows = pl.cdiv(rows, block_rows)
    grid_cols = pl.cdiv(cols, block_cols)
    rows_padded = grid_rows * block_rows

    # ---- operand prep ----------------------------------------------------------
    # Lane-dense view: row (n*C + c) of x2 is the (n, c) channel plane (H*W elems)
    # and gets bias value bias[0, c, 0, 0].
    x2 = x.reshape(rows, cols)
    b_col = jnp.tile(bias.reshape(C, 1).astype(compute_dtype), (N, 1))   # (rows, 1)
    if rows_padded != rows:
        b_col = jnp.pad(b_col, ((0, rows_padded - rows), (0, 0)))        # keep in-kernel ds in-bounds

    # ---- VMEM budget (double-buffered in + out blocks, resident bias, headroom) ---
    block_bytes = block_rows * block_cols * itemsize
    bias_bytes = rows_padded * jnp.dtype(compute_dtype).itemsize
    needed = 4 * block_bytes + bias_bytes + 4 * _MIB
    vmem_limit = int(min(max(needed, 8 * _MIB), 48 * _MIB))

    cost = pl.CostEstimate(
        flops=rows * cols,
        transcendentals=0,
        bytes_accessed=2 * rows * cols * itemsize + bias_bytes,
    )

    kernel = functools.partial(
        _learnable_bias_kernel, block_rows=block_rows, compute_dtype=compute_dtype)

    out2 = pl.pallas_call(
        kernel,
        out_shape=jax.ShapeDtypeStruct((rows, cols), x.dtype),
        grid=(grid_rows, grid_cols),
        in_specs=[
            pl.BlockSpec((block_rows, block_cols), lambda i, j: (i, j)),
            # Full-extent bias block with a constant index -> VMEM-resident, no per-step DMA.
            pl.BlockSpec((rows_padded, 1), lambda i, j: (0, 0)),
        ],
        out_specs=pl.BlockSpec((block_rows, block_cols), lambda i, j: (i, j)),
        compiler_params=pltpu.CompilerParams(
            dimension_semantics=("parallel", "parallel"),
            vmem_limit_bytes=vmem_limit,
        ),
        cost_estimate=cost,
    )(x2, b_col)

    return out2.reshape(N, C, H, W)


if __name__ == "__main__":
    key = jax.random.PRNGKey(0)
    k1, k2, k3 = jax.random.split(key, 3)

    # 1) Small shape consistent with the module: single-block path.
    N, C, H, W = 2, 4, 16, 16
    x = jax.random.normal(k1, (N, C, H, W), dtype=jnp.float32)
    # PyTorch inits the bias to zeros; use a deterministic nonzero ramp so the
    # broadcast add is actually exercised.
    bias = (jnp.arange(C, dtype=jnp.float32) * 0.1 - 0.15).reshape(1, C, 1, 1)
    out = learnable_bias(x, bias)
    jax.block_until_ready(out)
    assert out.shape == x.shape and out.dtype == x.dtype
    assert jnp.allclose(out, x + bias), "mismatch (single-block path)"

    # 2) Row-tiled grid path (grid = (4, 1), resident bias sliced per step).
    N2, C2, H2, W2 = 8, 4, 16, 16
    x_big = jax.random.normal(k2, (N2, C2, H2, W2), dtype=jnp.float32)
    bias2 = (jnp.arange(C2, dtype=jnp.float32) * 0.05 + 0.2).reshape(1, C2, 1, 1)
    out_big = learnable_bias(x_big, bias2, target_block_bytes=8 * 1024)
    jax.block_until_ready(out_big)
    assert jnp.allclose(out_big, x_big + bias2), "mismatch (row-tiled path)"

    # 3) 2-D (row + 128-column) blocked path (grid = (4, 2)).
    out_2d = learnable_bias(x_big, bias2, target_block_bytes=4 * 1024)
    jax.block_until_ready(out_2d)
    assert jnp.allclose(out_2d, x_big + bias2), "mismatch (column-blocked path)"

    # 4) Multi-TC split path: would be a single block, forced to >=2 row blocks.
    out_split = learnable_bias(x_big, bias2, min_split_bytes=1024)
    jax.block_until_ready(out_split)
    assert jnp.allclose(out_split, x_big + bias2), "mismatch (split path)"

    # 5) bf16 activations + fp32 master bias: add computed in fp32, cast to bf16.
    x_bf16 = jax.random.normal(k3, (N, C, H, W), dtype=jnp.float32).astype(jnp.bfloat16)
    out_bf16 = learnable_bias(x_bf16, bias)
    jax.block_until_ready(out_bf16)
    ref_bf16 = (x_bf16.astype(jnp.float32) + bias).astype(jnp.bfloat16)
    assert out_bf16.dtype == jnp.bfloat16
    assert jnp.allclose(out_bf16.astype(jnp.float32), ref_bf16.astype(jnp.float32)), \
        "mismatch (bf16 path)"

    print("KERNEL_OK")
</pallas_src>

<mosaic_0001>
module attributes {stable_mosaic.version = 11 : i64} {
  func.func @_learnable_bias_kernel(%arg0: i32, %arg1: i32, %arg2: memref<8x256xf32, #tpu.memory_space<vmem>>, %arg3: memref<8x1xf32, #tpu.memory_space<vmem>>, %arg4: memref<8x256xf32, #tpu.memory_space<vmem>>) attributes {dimension_semantics = [#tpu.dimension_semantics<parallel>, #tpu.dimension_semantics<parallel>], iteration_bounds = array<i64: 1, 1>, scalar_prefetch = 0 : i64, scratch_operands = 0 : i64, tpu.core_type = #tpu.core_type<tc>, window_params = [{transform_indices = @transform_0, window_bounds = array<i64: 8, 256>}, {pipeline_mode = #tpu.pipeline_mode<synchronous>, transform_indices = @transform_1, window_bounds = array<i64: 8, 1>}, {transform_indices = @transform_2, window_bounds = array<i64: 8, 256>}]} {
    %c8_i32 = arith.constant 8 : i32
    %0 = arith.muli %arg0, %c8_i32 : i32
    %1 = tpu.assume_multiple %0, 8 : i32
    %2 = arith.index_cast %1 : i32 to index
    %c0 = arith.constant 0 : index
    %3 = vector.load %arg3[%2, %c0] : memref<8x1xf32, #tpu.memory_space<vmem>>, vector<8x1xf32>
    %c0_0 = arith.constant 0 : index
    %c0_1 = arith.constant 0 : index
    %4 = vector.load %arg2[%c0_0, %c0_1] : memref<8x256xf32, #tpu.memory_space<vmem>>, vector<8x256xf32>
    %5 = vector.broadcast %3 : vector<8x1xf32> to vector<8x256xf32>
    %6 = arith.addf %4, %5 : vector<8x256xf32>
    %c0_2 = arith.constant 0 : index
    %c0_3 = arith.constant 0 : index
    %7 = vector.load %arg4[%c0_2, %c0_3] : memref<8x256xf32, #tpu.memory_space<vmem>>, vector<8x256xf32>
    tpu.vector_store %arg4[%c0_2, %c0_3], %6 {strides = array<i32>} : memref<8x256xf32, #tpu.memory_space<vmem>>, vector<8x256xf32>,
    return
  }
  func.func @transform_0(%arg0: i32, %arg1: i32) -> (i32, i32) {
    %c0_i32 = arith.constant 0 : i32
    return %arg0, %arg1 : i32, i32
  }
  func.func @transform_1(%arg0: i32, %arg1: i32) -> (i32, i32) {
    %c0_i32 = arith.constant 0 : i32
    %c0_i32_0 = arith.constant 0 : i32
    %c0_i32_1 = arith.constant 0 : i32
    return %c0_i32, %c0_i32_0 : i32, i32
  }
  func.func @transform_2(%arg0: i32, %arg1: i32) -> (i32, i32) {
    %c0_i32 = arith.constant 0 : i32
    return %arg0, %arg1 : i32, i32
  }
}

</mosaic_0001>

<llo_original>
// kernel: tpu_custom_call.1
$region0: #{tpu_custom_call.1}
  #allocation0 [shape = 'u32[]', space=smem, size = 0x4, offset = 0x4, fixed_abs, tag = 'smem constant byte address 0x4 - core index']
  #allocation1 [shape = 'u32[144,128]{1,0:T(1,128)}', space=vmem, size = 0x12000, scoped, tag = 'internal scratch']
  %s0 = inlined_call_operand.hbm [shape: f32[8,256], index: 0, kind: input, shape index: {}]
  %s1 = inlined_call_operand.vmem [shape: f32[8,1], index: 1, kind: input, shape index: {}]
  %s2 = inlined_call_operand.hbm [shape: f32[8,256], index: 2, kind: output, shape index: {}]
  %s3 = sld [smem:[#allocation0]]
  $region22: #{tpu_custom_call.1} parent=0
    _
  %s5 = ssub.s32 1, %s3
  %s6 = scalar_select 0, %s5, %s3
  $region1: #{tpu_custom_call.1} parent=0
    #allocation2 [shape = 'u8[8192]{0}', space=vmem, size = 0x2000, scoped, tag = 'input window, operand 0, single buffered']
    #allocation3 [shape = 's32[1]{0}', space=sflag, size = 0x4, scoped, tag = 'scoped memory for tpu_custom_call.1']
    #allocation4 [shape = 's32[1]{0}', space=sflag, size = 0x4, scoped, tag = 'scoped memory for tpu_custom_call.1']
    #allocation5 [shape = 'u8[8192]{0}', space=vmem, size = 0x2000, scoped, tag = 'output window, operand 0, single buffered']
    %7 = vsyncpa [#allocation3], 0
    %8 = vsyncpa [#allocation4], 0
    // Predicated region
    $region2: #{tpu_custom_call.1} parent=1 // pred_check
      _
    $region3: #{tpu_custom_call.1} parent=1 // pred_check_branch
      %10 = sbr.rel (0) target = $region5
    $region4: #{tpu_custom_call.1} parent=1 // pred_region
      %s12 = ssub.s32 256, 256
      %13 = vsyncadd [#allocation3], %s12
      %s15 = sshll.u32 [#allocation2], 4
      %s16 = int_to_ptr.vmem [resolvable:$true] %s15
      %18 = dma.hbm_to_vmem [thread:$0]  %s0, 256, %s16, [#allocation3]
    $region5: #{tpu_custom_call.1} parent=1 // pred_fallthru
      _
    // Predicated region
    $region6: #{tpu_custom_call.1} parent=1 // pred_check
      _
    $region7: #{tpu_custom_call.1} parent=1 // pred_check_branch
      %20 = sbr.rel (0) target = $region9
    $region8: #{tpu_custom_call.1} parent=1 // pred_region
      _
    $region9: #{tpu_custom_call.1} parent=1 // pred_fallthru
      _
    // Predicated region
    $region10: #{tpu_custom_call.1} parent=1 // pred_check
      _
    $region11: #{tpu_custom_call.1} parent=1 // pred_check_branch
      %22 = sbr.rel (0) target = $region13
    $region12: #{tpu_custom_call.1} parent=1 // pred_region
      %23 = dma.done [#allocation3], 256
    $region13: #{tpu_custom_call.1} parent=1 // pred_fallthru
      _
    %s24 = smul.u32 0, 8
    %s25 = scalar_lea.vmem %s1, %s24
    %v26 = vld [vmem:[%s25] sm:$0xff]
    %v27 = vld [vmem:[#allocation2] sm:$0xff]
    %v28 = vld [vmem:[#allocation2 + $0x8] sm:$0xff]
    %30 = vset.pattern.permute.xlu0 0
    %31 = vperm.xlu0 %30, %v26
    %v32 = vpop.permute.xlu0 %31
    %v34 = vadd.f32 %v27, %v32
    %v35 = vadd.f32 %v28, %v32
    %36 = vst [vmem:[#allocation5] sm:$0xff] %v34
    %37 = vst [vmem:[#allocation5 + $0x8] sm:$0xff] %v35
    // Predicated region
    $region14: #{tpu_custom_call.1} parent=1 // pred_check
      _
    $region15: #{tpu_custom_call.1} parent=1 // pred_check_branch
      %39 = sbr.rel (0) target = $region17
    $region16: #{tpu_custom_call.1} parent=1 // pred_region
      %s41 = ssub.s32 256, 256
      %42 = vsyncadd [#allocation4], %s41
      %s44 = sshll.u32 [#allocation5], 4
      %s45 = int_to_ptr.vmem [resolvable:$true] %s44
      %47 = dma.vmem_to_hbm [thread:$0]  %s45, 256, %s2, [#allocation4]
    $region17: #{tpu_custom_call.1} parent=1 // pred_fallthru
      _
    // Predicated region
    $region18: #{tpu_custom_call.1} parent=1 // pred_check
      _
    $region19: #{tpu_custom_call.1} parent=1 // pred_check_branch
      %49 = sbr.rel (0) target = $region21
    $region20: #{tpu_custom_call.1} parent=1 // pred_region
      %50 = dma.done [#allocation4], 256
    $region21: #{tpu_custom_call.1} parent=1 // pred_fallthru
      _
    %51 = vsyncpa [#allocation3], 1
    %52 = vsyncpa [#allocation4], 1

</llo_original>
